<compile_context>
chip_gen: v6e
topology: v6e:2x2x1
jax: 0.10.0
libtpu: 0.0.40
codegen_flags: <defaults>
</compile_context>

<pallas_src>
import jax
import jax.numpy as jnp
from jax.experimental import pallas as pl
from jax.experimental.pallas import tpu as pltpu

EPS = 1e-5  # RevIN default eps


def _rlinear_kernel(x_ref, params_ref, o_ref):
    # x_ref      : (B, L, C)       raw input series (natural layout)
    # params_ref : (P, L + 2*C)    [ W | scale (row-tiled) | offset ]
    # o_ref      : (B, P, C)       forecast (natural layout)
    B, L, C = x_ref.shape

    x = x_ref[...].astype(jnp.float32)                          # [B, L, C]

    # --- RevIN 'norm' statistics (over seq axis, per (batch, channel)) ---
    mean = jnp.mean(x, axis=1, keepdims=True)                   # [B, 1, C]
    var = jnp.mean((x - mean) ** 2, axis=1, keepdims=True)      # [B, 1, C]
    stdev = jnp.sqrt(var + EPS)                                 # [B, 1, C]
    z = (x - mean) / stdev                                      # normalized series

    # Dropout(0.2) is identity at inference -> nothing to do.

    # --- unpack the fused parameter slab (static lane slices, one vreg) ---
    params = params_ref[...].astype(jnp.float32)                # [P, L + 2C]
    w = params[:, :L]                                           # [P, L]
    scale = params[:, L:L + C]                                  # [P, C]
    offset = params[:, L + C:L + 2 * C]                         # [P, C]

    # --- Linear along seq axis + folded affine/denorm, per batch (B is tiny) ---
    for b in range(B):
        core = jnp.dot(w, z[b], preferred_element_type=jnp.float32)   # [P, C]
        y = (core * scale + offset) * stdev[b] + mean[b]               # [P, C]
        o_ref[b] = y.astype(o_ref.dtype)


def make_rlinear_params(w, b_lin, affine_w, affine_b):
    """One-time (model-init) parameter fold.

    RevIN affine, Linear bias and RevIN denorm inverse-affine are collapsed into
    per-(p, c) scale/offset constants and packed next to W:
        pred = (W @ z) * aw + ab * rowsum(W) + b
        y    = (pred - ab) / (aw + eps^2) * stdev + mean
             = ((W @ z) * scale + offset) * stdev + mean          (exact)
    """
    P, L = w.shape
    C = affine_w.shape[0]
    denom = affine_w + EPS * EPS                                       # [C]
    scale = affine_w / denom                                           # [C]
    row_sum = jnp.sum(w, axis=1)                                       # [P]
    offset = (affine_b[None, :] * (row_sum[:, None] - 1.0)
              + b_lin[:, None]) / denom[None, :]                       # [P, C]
    scale_t = jnp.broadcast_to(scale[None, :], (P, C))                 # [P, C]
    return jnp.concatenate([w, scale_t, offset], axis=1)               # [P, L+2C]


@jax.jit
def rlinear_forward(x, params):
    """x: [B, L, C], params: [P, L + 2C]  ->  pred: [B, P, C]"""
    B, L, C = x.shape
    P = params.shape[0]
    vmem = pl.BlockSpec(memory_space=pltpu.MemorySpace.VMEM)
    return pl.pallas_call(
        _rlinear_kernel,
        out_shape=jax.ShapeDtypeStruct((B, P, C), x.dtype),
        in_specs=[vmem, vmem],
        out_specs=vmem,
    )(x, params)


def rlinear_reference(x, w, b_lin, affine_w, affine_b):
    """Pure-JAX reference matching the PyTorch forward (eval mode)."""
    mean = jnp.mean(x, axis=1, keepdims=True)
    stdev = jnp.sqrt(jnp.var(x, axis=1, keepdims=True) + EPS)
    xn = (x - mean) / stdev
    xn = xn * affine_w + affine_b
    # Linear(seq_len -> pred_len) on x.transpose(1,2), then transpose back
    pred = jnp.einsum("blc,pl->bpc", xn, w) + b_lin[None, :, None]
    pred = (pred - affine_b) / (affine_w + EPS * EPS)
    pred = pred * stdev + mean
    return pred


if __name__ == "__main__":
    B, L, P, C = 2, 16, 8, 4  # batch, seq_len, pred_len, enc_in

    key = jax.random.PRNGKey(0)
    kx, kw, kb, kaw, kab = jax.random.split(key, 5)

    # inputs (x_mark_enc / x_dec / x_mark_dec are unused in the shared-Linear branch)
    x = jax.random.normal(kx, (B, L, C), dtype=jnp.float32)

    # deterministic parameters: Linear(seq_len, pred_len) + non-trivial RevIN affine
    # (perturbed from the ones/zeros init so the folded affine path is exercised)
    bound = 1.0 / jnp.sqrt(jnp.float32(L))
    w = jax.random.uniform(kw, (P, L), minval=-bound, maxval=bound, dtype=jnp.float32)
    b_lin = jax.random.uniform(kb, (P,), minval=-bound, maxval=bound, dtype=jnp.float32)
    affine_w = 1.0 + 0.1 * jax.random.normal(kaw, (C,), dtype=jnp.float32)
    affine_b = 0.05 * jax.random.normal(kab, (C,), dtype=jnp.float32)

    # init-time fold + pack (hoisted out of the per-call path)
    params = make_rlinear_params(w, b_lin, affine_w, affine_b)

    pred = rlinear_forward(x, params)
    pred = jax.block_until_ready(pred)

    ref = rlinear_reference(x, w, b_lin, affine_w, affine_b)
    assert pred.shape == (B, P, C)
    assert jnp.allclose(pred, ref, atol=1e-4, rtol=1e-4), "mismatch vs reference"

    print("KERNEL_OK")
</pallas_src>

<mosaic_0001>
module attributes {stable_mosaic.version = 11 : i64} {
  func.func @_rlinear_kernel(%arg0: memref<2x16x4xf32, #tpu.memory_space<vmem>>, %arg1: memref<8x24xf32, #tpu.memory_space<vmem>>, %arg2: memref<2x8x4xf32, #tpu.memory_space<vmem>>) attributes {dimension_semantics = [], scalar_prefetch = 0 : i64, scratch_operands = 0 : i64, tpu.core_type = #tpu.core_type<tc>} {
    %c0 = arith.constant 0 : index
    %c0_0 = arith.constant 0 : index
    %c0_1 = arith.constant 0 : index
    %0 = vector.load %arg0[%c0, %c0_0, %c0_1] : memref<2x16x4xf32, #tpu.memory_space<vmem>>, vector<2x16x4xf32>
    %cst = arith.constant dense<0.000000e+00> : vector<2x4xf32>
    %1 = vector.multi_reduction <add>, %0, %cst [1] : vector<2x16x4xf32> to vector<2x4xf32>
    %2 = vector.shape_cast %1 : vector<2x4xf32> to vector<2x1x4xf32>
    %cst_2 = arith.constant 1.600000e+01 : f32
    %3 = vector.broadcast %cst_2 : f32 to vector<2x1x4xf32>
    %4 = arith.divf %2, %3 : vector<2x1x4xf32>
    %5 = vector.broadcast %4 : vector<2x1x4xf32> to vector<2x16x4xf32>
    %6 = arith.subf %0, %5 : vector<2x16x4xf32>
    %7 = arith.mulf %6, %6 : vector<2x16x4xf32>
    %cst_3 = arith.constant dense<0.000000e+00> : vector<2x4xf32>
    %8 = vector.multi_reduction <add>, %7, %cst_3 [1] : vector<2x16x4xf32> to vector<2x4xf32>
    %9 = vector.shape_cast %8 : vector<2x4xf32> to vector<2x1x4xf32>
    %cst_4 = arith.constant 1.600000e+01 : f32
    %10 = vector.broadcast %cst_4 : f32 to vector<2x1x4xf32>
    %11 = arith.divf %9, %10 : vector<2x1x4xf32>
    %cst_5 = arith.constant 9.99999974E-6 : f32
    %12 = vector.broadcast %cst_5 : f32 to vector<2x1x4xf32>
    %13 = arith.addf %11, %12 : vector<2x1x4xf32>
    %14 = math.sqrt %13 : vector<2x1x4xf32>
    %15 = vector.broadcast %4 : vector<2x1x4xf32> to vector<2x16x4xf32>
    %16 = arith.subf %0, %15 : vector<2x16x4xf32>
    %17 = vector.broadcast %14 : vector<2x1x4xf32> to vector<2x16x4xf32>
    %18 = arith.divf %16, %17 : vector<2x16x4xf32>
    %c0_6 = arith.constant 0 : index
    %c0_7 = arith.constant 0 : index
    %19 = vector.load %arg1[%c0_6, %c0_7] : memref<8x24xf32, #tpu.memory_space<vmem>>, vector<8x24xf32>
    %20 = vector.extract_strided_slice %19 {offsets = [0, 0], sizes = [8, 16], strides = [1, 1]} : vector<8x24xf32> to vector<8x16xf32>
    %21 = vector.extract_strided_slice %19 {offsets = [0, 16], sizes = [8, 4], strides = [1, 1]} : vector<8x24xf32> to vector<8x4xf32>
    %22 = vector.extract_strided_slice %19 {offsets = [0, 20], sizes = [8, 4], strides = [1, 1]} : vector<8x24xf32> to vector<8x4xf32>
    %23 = vector.extract_strided_slice %18 {offsets = [0, 0, 0], sizes = [1, 16, 4], strides = [1, 1, 1]} : vector<2x16x4xf32> to vector<1x16x4xf32>
    %24 = vector.shape_cast %23 : vector<1x16x4xf32> to vector<16x4xf32>
    %cst_8 = arith.constant dense<0.000000e+00> : vector<8x4xf32>
    %25 = tpu.matmul %20, %24, %cst_8 {dimension_numbers = #tpu.dot_dimension_numbers<[1], [0], [0], [1], [0, 0, 1, 1], [], []>} : vector<8x16xf32>, vector<16x4xf32>, vector<8x4xf32> -> vector<8x4xf32>
    %26 = arith.mulf %25, %21 : vector<8x4xf32>
    %27 = arith.addf %26, %22 : vector<8x4xf32>
    %28 = vector.extract_strided_slice %14 {offsets = [0, 0, 0], sizes = [1, 1, 4], strides = [1, 1, 1]} : vector<2x1x4xf32> to vector<1x1x4xf32>
    %29 = vector.shape_cast %28 : vector<1x1x4xf32> to vector<1x4xf32>
    %30 = vector.broadcast %29 : vector<1x4xf32> to vector<8x4xf32>
    %31 = arith.mulf %27, %30 : vector<8x4xf32>
    %32 = vector.extract_strided_slice %4 {offsets = [0, 0, 0], sizes = [1, 1, 4], strides = [1, 1, 1]} : vector<2x1x4xf32> to vector<1x1x4xf32>
    %33 = vector.shape_cast %32 : vector<1x1x4xf32> to vector<1x4xf32>
    %34 = vector.broadcast %33 : vector<1x4xf32> to vector<8x4xf32>
    %35 = arith.addf %31, %34 : vector<8x4xf32>
    %c0_9 = arith.constant 0 : index
    %c0_10 = arith.constant 0 : index
    %c0_11 = arith.constant 0 : index
    %36 = vector.load %arg2[%c0_9, %c0_10, %c0_11] : memref<2x8x4xf32, #tpu.memory_space<vmem>>, vector<1x8x4xf32>
    %37 = vector.shape_cast %36 : vector<1x8x4xf32> to vector<8x4xf32>
    %38 = vector.shape_cast %35 : vector<8x4xf32> to vector<1x8x4xf32>
    tpu.vector_store %arg2[%c0_9, %c0_10, %c0_11], %38 {strides = array<i32>} : memref<2x8x4xf32, #tpu.memory_space<vmem>>, vector<1x8x4xf32>,
    %39 = vector.extract_strided_slice %18 {offsets = [1, 0, 0], sizes = [1, 16, 4], strides = [1, 1, 1]} : vector<2x16x4xf32> to vector<1x16x4xf32>
    %40 = vector.shape_cast %39 : vector<1x16x4xf32> to vector<16x4xf32>
    %cst_12 = arith.constant dense<0.000000e+00> : vector<8x4xf32>
    %41 = tpu.matmul %20, %40, %cst_12 {dimension_numbers = #tpu.dot_dimension_numbers<[1], [0], [0], [1], [0, 0, 1, 1], [], []>} : vector<8x16xf32>, vector<16x4xf32>, vector<8x4xf32> -> vector<8x4xf32>
    %42 = arith.mulf %41, %21 : vector<8x4xf32>
    %43 = arith.addf %42, %22 : vector<8x4xf32>
    %44 = vector.extract_strided_slice %14 {offsets = [1, 0, 0], sizes = [1, 1, 4], strides = [1, 1, 1]} : vector<2x1x4xf32> to vector<1x1x4xf32>
    %45 = vector.shape_cast %44 : vector<1x1x4xf32> to vector<1x4xf32>
    %46 = vector.broadcast %45 : vector<1x4xf32> to vector<8x4xf32>
    %47 = arith.mulf %43, %46 : vector<8x4xf32>
    %48 = vector.extract_strided_slice %4 {offsets = [1, 0, 0], sizes = [1, 1, 4], strides = [1, 1, 1]} : vector<2x1x4xf32> to vector<1x1x4xf32>
    %49 = vector.shape_cast %48 : vector<1x1x4xf32> to vector<1x4xf32>
    %50 = vector.broadcast %49 : vector<1x4xf32> to vector<8x4xf32>
    %51 = arith.addf %47, %50 : vector<8x4xf32>
    %c1 = arith.constant 1 : index
    %c0_13 = arith.constant 0 : index
    %c0_14 = arith.constant 0 : index
    %52 = vector.load %arg2[%c1, %c0_13, %c0_14] : memref<2x8x4xf32, #tpu.memory_space<vmem>>, vector<1x8x4xf32>
    %53 = vector.shape_cast %52 : vector<1x8x4xf32> to vector<8x4xf32>
    %54 = vector.shape_cast %51 : vector<8x4xf32> to vector<1x8x4xf32>
    tpu.vector_store %arg2[%c1, %c0_13, %c0_14], %54 {strides = array<i32>} : memref<2x8x4xf32, #tpu.memory_space<vmem>>, vector<1x8x4xf32>,
    return
  }
}

</mosaic_0001>

<llo_original>
// kernel: rlinear_forward.1
$region0: #{rlinear_forward.1}
  #allocation0 [shape = 'u32[]', space=smem, size = 0x4, offset = 0x4, fixed_abs, tag = 'smem constant byte address 0x4 - core index']
  #allocation1 [shape = 'u32[144,128]{1,0:T(1,128)}', space=vmem, size = 0x12000, scoped, tag = 'internal scratch']
  %s0 = inlined_call_operand.vmem [shape: f32[2,16,4], index: 0, kind: input, shape index: {}]
  %s1 = inlined_call_operand.vmem [shape: f32[8,24], index: 1, kind: input, shape index: {}]
  %s2 = inlined_call_operand.vmem [shape: f32[2,8,4], index: 2, kind: output, shape index: {}]
  %s3 = sld [smem:[#allocation0]]
  $region18: #{rlinear_forward.1} parent=0
    _
  %s5 = ssub.s32 1, %s3
  %s6 = scalar_select 0, %s5, %s3
  // Predicated region
  $region2: #{rlinear_forward.1} parent=0 // pred_check
    _
  $region3: #{rlinear_forward.1} parent=0 // pred_check_branch
    %8 = sbr.rel (0) target = $region5
  $region4: #{rlinear_forward.1} parent=0 // pred_region
    _
  $region5: #{rlinear_forward.1} parent=0 // pred_fallthru
    _
  // Predicated region
  $region6: #{rlinear_forward.1} parent=0 // pred_check
    _
  $region7: #{rlinear_forward.1} parent=0 // pred_check_branch
    %10 = sbr.rel (0) target = $region9
  $region8: #{rlinear_forward.1} parent=0 // pred_region
    _
  $region9: #{rlinear_forward.1} parent=0 // pred_fallthru
    _
  %v11 = vld [vmem:[%s0] sm:$0xff]
  %v12 = vld [vmem:[%s0 + $0x8] sm:$0xff]
  %v13 = vld [vmem:[%s0 + $0x10] sm:$0xff]
  %v14 = vld [vmem:[%s0 + $0x18] sm:$0xff]
  %vm15 = vcmask 31744
  %v16 = vsel %vm15, %v11, 0.0
  %v17 = vsel %vm15, %v12, 0.0
  %v18 = vadd.f32 %v16, %v17
  %v19 = vrot.slane %v18, 4
  %v20 = vadd.f32 %v18, %v19
  %v21 = vrot.slane %v20, 2
  %v22 = vadd.f32 %v20, %v21
  %v23 = vrot.slane %v22, 1
  %v24 = vadd.f32 %v22, %v23
  %v25 = vsel %vm15, %v13, 0.0
  %v26 = vsel %vm15, %v14, 0.0
  %v27 = vadd.f32 %v25, %v26
  %v28 = vrot.slane %v27, 4
  %v29 = vadd.f32 %v27, %v28
  %v30 = vrot.slane %v29, 2
  %v31 = vadd.f32 %v29, %v30
  %v32 = vrot.slane %v31, 1
  %v33 = vadd.f32 %v31, %v32
  %v34 = vrcp.pop 16.0
  %v35 = vmul.f32 %v24, %v34
  %v36 = vmul.f32 %v33, %v34
  %v37 = vsub.f32 %v11, %v35
  %v38 = vsub.f32 %v12, %v35
  %v39 = vsub.f32 %v13, %v36
  %v40 = vsub.f32 %v14, %v36
  %v41 = vmul.f32 %v37, %v37
  %v42 = vmul.f32 %v38, %v38
  %v43 = vmul.f32 %v39, %v39
  %v44 = vmul.f32 %v40, %v40
  %v45 = vsel %vm15, %v41, 0.0
  %v46 = vsel %vm15, %v42, 0.0
  %v47 = vadd.f32 %v45, %v46
  %v48 = vrot.slane %v47, 4
  %v49 = vadd.f32 %v47, %v48
  %v50 = vrot.slane %v49, 2
  %v51 = vadd.f32 %v49, %v50
  %v52 = vrot.slane %v51, 1
  %v53 = vadd.f32 %v51, %v52
  %v54 = vsel %vm15, %v43, 0.0
  %v55 = vsel %vm15, %v44, 0.0
  %v56 = vadd.f32 %v54, %v55
  %v57 = vrot.slane %v56, 4
  %v58 = vadd.f32 %v56, %v57
  %v59 = vrot.slane %v58, 2
  %v60 = vadd.f32 %v58, %v59
  %v61 = vrot.slane %v60, 1
  %v62 = vadd.f32 %v60, %v61
  %v63 = vmul.f32 %v53, %v34
  %v64 = vmul.f32 %v62, %v34
  %v65 = vadd.f32 %v63, 1e-05
  %v66 = vadd.f32 %v64, 1e-05
  %v67 = vrsqrt.pop %v65
  %v68 = vmul.f32 %v65, %v67
  %vm69 = vcmp.eq.f32.partialorder %v65, inf
  %v70 = vsel %vm69, %v65, %v68
  %vm71 = vcmp.eq.f32.partialorder %v65, 0.0
  %v72 = vand.u32 %v65, 2147483648
  %v73 = vsel %vm71, %v72, %v70
  %v74 = vrsqrt.pop %v66
  %v75 = vmul.f32 %v66, %v74
  %vm76 = vcmp.eq.f32.partialorder %v66, inf
  %v77 = vsel %vm76, %v66, %v75
  %vm78 = vcmp.eq.f32.partialorder %v66, 0.0
  %v79 = vand.u32 %v66, 2147483648
  %v80 = vsel %vm78, %v79, %v77
  %v81 = vrcp.pop %v73
  %v82 = vmul.f32 %v37, %v81
  %v83 = vmul.f32 %v38, %v81
  %v84 = vrcp.pop %v80
  %v85 = vmul.f32 %v39, %v84
  %v86 = vmul.f32 %v40, %v84
  %v87 = vld [vmem:[%s1] sm:$0xff]
  %vm88 = vcmask 130048
  %v90 = vsel %vm88, %v87, 0
  %92 = vmatprep.subr.mxu0 0.0
  %93 = vmatpush1.msra.mxu0 0.0
  %94 = vmatprep.subr.mxu0 0.0
  %95 = vmatpush1.msra.mxu0 0.0
  %96 = vmatprep.subr.mxu0 0.0
  %97 = vmatpush1.msra.mxu0 0.0
  %98 = vmatprep.subr.mxu0 0.0
  %99 = vmatpush1.msra.mxu0 0.0
  %100 = vmatprep.subr.mxu0 0.0
  %101 = vmatpush1.msra.mxu0 0.0
  %102 = vmatprep.subr.mxu0 0.0
  %103 = vmatpush1.msra.mxu0 0.0
  %104 = vmatprep.subr.mxu0 0.0
  %105 = vmatpush1.msra.mxu0 0.0
  %106 = vmatprep.subr.mxu0 0.0
  %107 = vmatpush1.msra.mxu0 0.0
  %108 = vmatprep.subr.mxu0 0.0
  %109 = vmatpush1.msra.mxu0 0.0
  %110 = vmatprep.subr.mxu0 0.0
  %111 = vmatpush1.msra.mxu0 0.0
  %112 = vmatprep.subr.mxu0 0.0
  %113 = vmatpush1.msra.mxu0 0.0
  %114 = vmatprep.subr.mxu0 0.0
  %115 = vmatpush1.msra.mxu0 0.0
  %116 = vmatprep.subr.mxu0 0.0
  %117 = vmatpush1.msra.mxu0 0.0
  %118 = vmatprep.subr.mxu0 0.0
  %119 = vmatpush1.msra.mxu0 0.0
  %120 = vmatprep.subr.mxu0 0.0
  %121 = vmatpush1.msra.mxu0 %v83
  %122 = vmatprep.subr.mxu0 0.0
  %123 = vmatpush1.msra.mxu0 %v82
  %124 = vmatprep.subr.mxu0 0.0
  %125 = vmatpush2.msra.mxu0 0.0
  %126 = vmatprep.subr.mxu0 0.0
  %127 = vmatpush2.msra.mxu0 0.0
  %128 = vmatprep.subr.mxu0 0.0
  %129 = vmatpush2.msra.mxu0 0.0
  %130 = vmatprep.subr.mxu0 0.0
  %131 = vmatpush2.msra.mxu0 0.0
  %132 = vmatprep.subr.mxu0 0.0
  %133 = vmatpush2.msra.mxu0 0.0
  %134 = vmatprep.subr.mxu0 0.0
  %135 = vmatpush2.msra.mxu0 0.0
  %136 = vmatprep.subr.mxu0 0.0
  %137 = vmatpush2.msra.mxu0 0.0
  %138 = vmatprep.subr.mxu0 0.0
  %139 = vmatpush2.msra.mxu0 0.0
  %140 = vmatprep.subr.mxu0 0.0
  %141 = vmatpush2.msra.mxu0 0.0
  %142 = vmatprep.subr.mxu0 0.0
  %143 = vmatpush2.msra.mxu0 0.0
  %144 = vmatprep.subr.mxu0 0.0
  %145 = vmatpush2.msra.mxu0 0.0
  %146 = vmatprep.subr.mxu0 0.0
  %147 = vmatpush2.msra.mxu0 0.0
  %148 = vmatprep.subr.mxu0 0.0
  %149 = vmatpush2.msra.mxu0 0.0
  %150 = vmatprep.subr.mxu0 0.0
  %151 = vmatpush2.msra.mxu0 0.0
  %152 = vmatprep.subr.mxu0 0.0
  %153 = vmatpush2.msra.mxu0 0.0
  %154 = vmatprep.subr.mxu0 0.0
  %155 = vmatpush2.msra.mxu0 0.0
  %156 = vmatprep.mubr.f32.mxu0 0.0
  %157 = vmatmul.mubr.f32.gmra.mxu0 %v90
  %v158 = vpop.f32.mrf.mxu0
  %v159 = vadd.f32 0.0, %v158
  %v160 = vpop.f32.mrf.mxu0
  %161 = vdwg.mxu0
  %162 = vrot.lane.b32.xlu0 %v87, 112
  %v163 = vpop.permute.xlu0 %162
  %v165 = vmul.f32 %v159, %v163
  %166 = vrot.lane.b32.xlu0 %v87, 108
  %v167 = vpop.permute.xlu0 %166
  %v169 = vadd.f32 %v165, %v167
  %v170 = vmul.f32 %v169, %v73
  %v171 = vadd.f32 %v170, %v35
  %172 = vst.msk [vmem:[%s2] sm:$0xff] %vm15, %v171
  %173 = vmatprep.subr.mxu0 0.0
  %174 = vmatpush1.msra.mxu0 0.0
  %175 = vmatprep.subr.mxu0 0.0
  %176 = vmatpush1.msra.mxu0 0.0
  %177 = vmatprep.subr.mxu0 0.0
  %178 = vmatpush1.msra.mxu0 0.0
  %179 = vmatprep.subr.mxu0 0.0
  %180 = vmatpush1.msra.mxu0 0.0
  %181 = vmatprep.subr.mxu0 0.0
  %182 = vmatpush1.msra.mxu0 0.0
  %183 = vmatprep.subr.mxu0 0.0
  %184 = vmatpush1.msra.mxu0 0.0
  %185 = vmatprep.subr.mxu0 0.0
  %186 = vmatpush1.msra.mxu0 0.0
  %187 = vmatprep.subr.mxu0 0.0
  %188 = vmatpush1.msra.mxu0 0.0
  %189 = vmatprep.subr.mxu0 0.0
  %190 = vmatpush1.msra.mxu0 0.0
  %191 = vmatprep.subr.mxu0 0.0
  %192 = vmatpush1.msra.mxu0 0.0
  %193 = vmatprep.subr.mxu0 0.0
  %194 = vmatpush1.msra.mxu0 0.0
  %195 = vmatprep.subr.mxu0 0.0
  %196 = vmatpush1.msra.mxu0 0.0
  %197 = vmatprep.subr.mxu0 0.0
  %198 = vmatpush1.msra.mxu0 0.0
  %199 = vmatprep.subr.mxu0 0.0
  %200 = vmatpush1.msra.mxu0 0.0
  %201 = vmatprep.subr.mxu0 0.0
  %202 = vmatpush1.msra.mxu0 %v86
  %203 = vmatprep.subr.mxu0 0.0
  %204 = vmatpush1.msra.mxu0 %v85
  %205 = vmatprep.subr.mxu0 0.0
  %206 = vmatpush2.msra.mxu0 0.0
  %207 = vmatprep.subr.mxu0 0.0
  %208 = vmatpush2.msra.mxu0 0.0
  %209 = vmatprep.subr.mxu0 0.0
  %210 = vmatpush2.msra.mxu0 0.0
  %211 = vmatprep.subr.mxu0 0.0
  %212 = vmatpush2.msra.mxu0 0.0
  %213 = vmatprep.subr.mxu0 0.0
  %214 = vmatpush2.msra.mxu0 0.0
  %215 = vmatprep.subr.mxu0 0.0
  %216 = vmatpush2.msra.mxu0 0.0
  %217 = vmatprep.subr.mxu0 0.0
  %218 = vmatpush2.msra.mxu0 0.0
  %219 = vmatprep.subr.mxu0 0.0
  %220 = vmatpush2.msra.mxu0 0.0
  %221 = vmatprep.subr.mxu0 0.0
  %222 = vmatpush2.msra.mxu0 0.0
  %223 = vmatprep.subr.mxu0 0.0
  %224 = vmatpush2.msra.mxu0 0.0
  %225 = vmatprep.subr.mxu0 0.0
  %226 = vmatpush2.msra.mxu0 0.0
  %227 = vmatprep.subr.mxu0 0.0
  %228 = vmatpush2.msra.mxu0 0.0
  %229 = vmatprep.subr.mxu0 0.0
  %230 = vmatpush2.msra.mxu0 0.0
  %231 = vmatprep.subr.mxu0 0.0
  %232 = vmatpush2.msra.mxu0 0.0
  %233 = vmatprep.subr.mxu0 0.0
  %234 = vmatpush2.msra.mxu0 0.0
  %235 = vmatprep.subr.mxu0 0.0
  %236 = vmatpush2.msra.mxu0 0.0
  %237 = vmatprep.mubr.f32.mxu0 0.0
  %238 = vmatmul.mubr.f32.gmra.mxu0 %v90
  %v239 = vpop.f32.mrf.mxu0
  %v240 = vadd.f32 0.0, %v239
  %v241 = vpop.f32.mrf.mxu0
  %242 = vdwg.mxu0
  %v243 = vmul.f32 %v240, %v163
  %v244 = vadd.f32 %v243, %v167
  %v245 = vmul.f32 %v244, %v80
  %v246 = vadd.f32 %v245, %v36
  %s247 = scalar_lea.vmem %s2, 8
  %248 = vst.msk [vmem:[%s247] sm:$0xff] %vm15, %v246
  // Predicated region
  $region10: #{rlinear_forward.1} parent=0 // pred_check
    _
  $region11: #{rlinear_forward.1} parent=0 // pred_check_branch
    %250 = sbr.rel (0) target = $region13
  $region12: #{rlinear_forward.1} parent=0 // pred_region
    _
  $region13: #{rlinear_forward.1} parent=0 // pred_fallthru
    _
  // Predicated region
  $region14: #{rlinear_forward.1} parent=0 // pred_check
    _
  $region15: #{rlinear_forward.1} parent=0 // pred_check_branch
    %252 = sbr.rel (0) target = $region17
  $region16: #{rlinear_forward.1} parent=0 // pred_region
    _
  $region17: #{rlinear_forward.1} parent=0 // pred_fallthru
    _

</llo_original>
